<compile_context>
chip_gen: v5e
topology: v5e:2x2
jax: 0.10.0
libtpu: 0.0.40
codegen_flags: <defaults>
</compile_context>

<pallas_src>
import jax
import jax.numpy as jnp
from jax.experimental import pallas as pl
from jax.experimental.pallas import tpu as pltpu


_NEG_SLOPE = 0.1  # matches nn.LeakyReLU(negative_slope=0.1) in the PyTorch spec


def _leaky(x):
    return jnp.where(x > 0, x, _NEG_SLOPE * x)


def attn_layer_kernel(items_ref, user_ref, mask_ref,
                      w1a_ref, w1b_ref, b1_ref, w2_ref, b2_ref, w3_ref,
                      out_ref):
    # items_ref: (TB, N, E) bf16      user_ref: (TB, 1, E) bf16
    # mask_ref : (TB, N, 1) f32 additive mask with the attn3 bias b3 folded in
    # w1a/w1b/w2: (E, E) bf16         b1/b2/w3: (1, E) f32
    # out_ref  : (TB, 1, E) f32
    tb, n, e = items_ref.shape
    tbn = tb * n

    items3 = items_ref[...]                                   # (TB, N, E) bf16
    items2 = items3.reshape(tbn, e)                           # rows for the MXU

    # attn1 on cat([items, user]) == items @ W1a + user @ W1b + b1 (split weight).
    h = jnp.dot(items2, w1a_ref[...],
                preferred_element_type=jnp.float32)           # (TB*N, E) f32
    hu = jnp.dot(user_ref[...].reshape(tb, e), w1b_ref[...],
                 preferred_element_type=jnp.float32) + b1_ref[...]   # (TB, E) f32
    hu_full = jnp.broadcast_to(hu[:, None, :], (tb, n, e)).reshape(tbn, e)
    h = _leaky(h + hu_full)                                   # f32 elementwise
    # TODO(synk): nn.Dropout is identity in eval mode; training-time dropout not implemented.

    # attn2 (MXU, bf16 in / f32 accumulate).
    h = jnp.dot(h.astype(jnp.bfloat16), w2_ref[...],
                preferred_element_type=jnp.float32) + b2_ref[...]
    h = _leaky(h)                                             # (TB*N, E) f32

    # attn3 (E -> 1) as a VPU multiply + lane reduction; b3 already lives in mask_ref.
    logits = jnp.sum(h * w3_ref[...], axis=-1, keepdims=True)  # (TB*N, 1) f32
    logits = logits.reshape(tb, n, 1) + mask_ref[...]          # (TB, N, 1) f32

    # softmax over the item axis (torch dim=1), per batch row, in f32.
    m = jnp.max(logits, axis=1, keepdims=True)                 # (TB, 1, 1)
    ex = jnp.exp(logits - m)
    a = ex * pl.reciprocal(jnp.sum(ex, axis=1, keepdims=True), approx=True)

    # weighted pooling of items_emb over the item axis.
    out_ref[...] = jnp.sum(a * items3.astype(jnp.float32), axis=1, keepdims=True)


def _vmem_capacity_bytes():
    """Per-core VMEM capacity (generation aware), conservative fallback if unknown."""
    try:
        cap = getattr(pltpu.get_tpu_info(), "vmem_capacity_bytes", None)
        if cap:
            return int(cap)
    except Exception:
        pass
    return 64 << 20  # v7x per-core size; conservative for v5e/v6e (128 MiB)


def _padded_bytes(sub, lane, itemsize):
    """Bytes of one (sub, lane) slab once padded to the native (sublane, 128) tile."""
    sub_tile = 16 if itemsize == 2 else 8
    return pl.cdiv(sub, sub_tile) * sub_tile * pl.cdiv(lane, 128) * 128 * itemsize


def _block_vmem_bytes(tb, n, e):
    """Conservative VMEM working-set estimate for one batch tile of `tb` batch rows."""
    items_blk = tb * _padded_bytes(n, e, 2)        # (TB, N, E) bf16
    user_blk = tb * _padded_bytes(1, e, 2)         # (TB, 1, E) bf16
    mask_blk = tb * _padded_bytes(n, 1, 4)         # (TB, N, 1) f32
    out_blk = tb * _padded_bytes(1, e, 4)          # (TB, 1, E) f32
    weights = 3 * _padded_bytes(e, e, 2) + 3 * _padded_bytes(1, e, 4)
    pipeline = 2 * (items_blk + user_blk + mask_blk + out_blk + weights)  # double-buffered
    rows_f32 = _padded_bytes(tb * n, e, 4)         # one (TB*N, E) f32 temp
    intermediates = 5 * rows_f32                   # h, hu_full, h2, bf16 copies, a*items
    return pipeline + intermediates


def _pick_batch_tile(B, n, e, vmem_budget_bytes):
    """Largest divisor TB of B that fits the budget while keeping >= 2 grid steps
    (v7x megacore sharding + pipeline overlap).  TB == B only if B == 1 or nothing
    smaller fits."""
    divisors = [d for d in range(1, B + 1) if B % d == 0]
    fitting = [d for d in divisors if _block_vmem_bytes(d, n, e) <= vmem_budget_bytes]
    if not fitting:
        return 1
    multi = [d for d in fitting if B // d >= 2]
    return max(multi) if multi else max(fitting)


def attn_layer_pallas(items_emb, user_emb, items_mask, params):
    """items_emb [B,N,E], user_emb [B,E], items_mask [B,N] (additive) -> [B,E] f32."""
    B, N, E = items_emb.shape
    w1, b1, w2, b2, w3, b3 = params

    # torch Linear: y = x @ W.T + b.  Pre-transpose once, split attn1's weight into
    # the items / user halves of the concatenated input, keep MXU operands bf16.
    w1t = w1.T.astype(jnp.bfloat16)                 # (2E, E)
    w1a, w1b = w1t[:E], w1t[E:]                     # (E, E) each
    w2t = w2.T.astype(jnp.bfloat16)                 # (E, E)
    w3row = w3.reshape(1, E).astype(jnp.float32)    # attn3 weight as a VPU row

    items_bf = items_emb.astype(jnp.bfloat16)                   # (B, N, E)
    user_bf = user_emb.astype(jnp.bfloat16).reshape(B, 1, E)    # (B, 1, E)
    # additive mask with the attn3 bias folded in, laid out like the in-kernel logits
    mask3 = (items_mask.astype(jnp.float32)
             + b3.astype(jnp.float32).reshape(1, 1)).reshape(B, N, 1)

    cap = _vmem_capacity_bytes()
    TB = _pick_batch_tile(B, N, E, vmem_budget_bytes=int(cap * 0.45))
    vmem_limit = int(min(cap * 0.9,
                         max(32 << 20, _block_vmem_bytes(TB, N, E) + (4 << 20))))

    grid = (B // TB,)
    wmap = lambda i: (0, 0)  # noqa: E731  (weights: same full block every step)

    out = pl.pallas_call(
        attn_layer_kernel,
        out_shape=jax.ShapeDtypeStruct((B, 1, E), jnp.float32),
        grid_spec=pltpu.PrefetchScalarGridSpec(
            num_scalar_prefetch=0,
            grid=grid,
            in_specs=[
                pl.BlockSpec((TB, N, E), lambda i: (i, 0, 0)),   # items (bf16)
                pl.BlockSpec((TB, 1, E), lambda i: (i, 0, 0)),   # user (bf16)
                pl.BlockSpec((TB, N, 1), lambda i: (i, 0, 0)),   # additive mask (+ b3)
                pl.BlockSpec((E, E), wmap),                      # w1a (bf16)
                pl.BlockSpec((E, E), wmap),                      # w1b (bf16)
                pl.BlockSpec((1, E), wmap),                      # b1  (f32)
                pl.BlockSpec((E, E), wmap),                      # w2  (bf16)
                pl.BlockSpec((1, E), wmap),                      # b2  (f32)
                pl.BlockSpec((1, E), wmap),                      # w3 row (f32)
            ],
            out_specs=pl.BlockSpec((TB, 1, E), lambda i: (i, 0, 0)),
        ),
        compiler_params=pltpu.CompilerParams(
            dimension_semantics=("parallel",),
            vmem_limit_bytes=vmem_limit),
    )(items_bf, user_bf, mask3,
      w1a, w1b, b1.reshape(1, E).astype(jnp.float32),
      w2t, b2.reshape(1, E).astype(jnp.float32), w3row)
    return out.reshape(B, E)


def attn_layer_ref(items_emb, user_emb, items_mask, params):
    w1, b1, w2, b2, w3, b3 = params
    u = jnp.broadcast_to(user_emb[:, None, :], items_emb.shape)
    h = jnp.concatenate([items_emb, u], axis=-1)
    h = _leaky(h @ w1.T + b1)
    h = _leaky(h @ w2.T + b2)
    h = h @ w3.T + b3 + items_mask[:, :, None].astype(jnp.float32)
    a = jax.nn.softmax(h, axis=1)
    return (a * items_emb).sum(axis=1)


def init_params(key, edim):
    # Deterministic init mimicking torch.nn.Linear default (uniform +-1/sqrt(fan_in)).
    ks = jax.random.split(key, 6)

    def lin(kw, kb, fan_in, fan_out):
        bound = 1.0 / jnp.sqrt(fan_in)
        w = jax.random.uniform(kw, (fan_out, fan_in), jnp.float32, -bound, bound)
        b = jax.random.uniform(kb, (fan_out,), jnp.float32, -bound, bound)
        return w, b

    w1, b1 = lin(ks[0], ks[1], 2 * edim, edim)
    w2, b2 = lin(ks[2], ks[3], edim, edim)
    w3, b3 = lin(ks[4], ks[5], edim, 1)
    return (w1, b1, w2, b2, w3, b3)


if __name__ == "__main__":
    B, N, E = 2, 8, 32
    key = jax.random.PRNGKey(0)
    k_items, k_user, k_mask, k_params = jax.random.split(key, 4)

    items_emb = jax.random.normal(k_items, (B, N, E), jnp.float32)
    user_emb = jax.random.normal(k_user, (B, E), jnp.float32)
    # additive mask: 0 for valid items, -1e4 for padded items
    valid = jax.random.bernoulli(k_mask, p=0.75, shape=(B, N))
    items_mask = jnp.where(valid, 0.0, -1e4).astype(jnp.float32)

    params = init_params(k_params, E)

    out = attn_layer_pallas(items_emb, user_emb, items_mask, params)
    out = jax.block_until_ready(out)

    ref = attn_layer_ref(items_emb, user_emb, items_mask, params)
    assert out.shape == (B, E)
    # bf16 MXU operands -> loosened tolerance vs. the pure-f32 reference.
    err = jnp.max(jnp.abs(out - ref))
    assert jnp.allclose(out, ref, atol=2e-2, rtol=2e-2), f"max abs err {err}"
    print("KERNEL_OK")
</pallas_src>

<mosaic_0001>
module attributes {stable_mosaic.version = 11 : i64} {
  func.func @attn_layer_kernel(%arg0: i32, %arg1: memref<1x8x32xbf16, #tpu.memory_space<vmem>>, %arg2: memref<1x1x32xbf16, #tpu.memory_space<vmem>>, %arg3: memref<1x8x1xf32, #tpu.memory_space<vmem>>, %arg4: memref<32x32xbf16, #tpu.memory_space<vmem>>, %arg5: memref<32x32xbf16, #tpu.memory_space<vmem>>, %arg6: memref<1x32xf32, #tpu.memory_space<vmem>>, %arg7: memref<32x32xbf16, #tpu.memory_space<vmem>>, %arg8: memref<1x32xf32, #tpu.memory_space<vmem>>, %arg9: memref<1x32xf32, #tpu.memory_space<vmem>>, %arg10: memref<1x1x32xf32, #tpu.memory_space<vmem>>) attributes {dimension_semantics = [#tpu.dimension_semantics<parallel>], iteration_bounds = array<i64: 2>, scalar_prefetch = 0 : i64, scratch_operands = 0 : i64, tpu.core_type = #tpu.core_type<tc>, window_params = [{transform_indices = @transform_0, window_bounds = array<i64: 1, 8, 32>}, {transform_indices = @transform_1, window_bounds = array<i64: 1, 1, 32>}, {transform_indices = @transform_2, window_bounds = array<i64: 1, 8, 1>}, {pipeline_mode = #tpu.pipeline_mode<synchronous>, transform_indices = @transform_3, window_bounds = array<i64: 32, 32>}, {pipeline_mode = #tpu.pipeline_mode<synchronous>, transform_indices = @transform_4, window_bounds = array<i64: 32, 32>}, {pipeline_mode = #tpu.pipeline_mode<synchronous>, transform_indices = @transform_5, window_bounds = array<i64: 1, 32>}, {pipeline_mode = #tpu.pipeline_mode<synchronous>, transform_indices = @transform_6, window_bounds = array<i64: 32, 32>}, {pipeline_mode = #tpu.pipeline_mode<synchronous>, transform_indices = @transform_7, window_bounds = array<i64: 1, 32>}, {pipeline_mode = #tpu.pipeline_mode<synchronous>, transform_indices = @transform_8, window_bounds = array<i64: 1, 32>}, {transform_indices = @transform_9, window_bounds = array<i64: 1, 1, 32>}]} {
    %c0 = arith.constant 0 : index
    %c0_0 = arith.constant 0 : index
    %c0_1 = arith.constant 0 : index
    %0 = vector.load %arg1[%c0, %c0_0, %c0_1] : memref<1x8x32xbf16, #tpu.memory_space<vmem>>, vector<1x8x32xbf16>
    %1 = vector.shape_cast %0 : vector<1x8x32xbf16> to vector<8x32xbf16>
    %c0_2 = arith.constant 0 : index
    %c0_3 = arith.constant 0 : index
    %2 = vector.load %arg4[%c0_2, %c0_3] : memref<32x32xbf16, #tpu.memory_space<vmem>>, vector<32x32xbf16>
    %cst = arith.constant dense<0.000000e+00> : vector<8x32xf32>
    %3 = tpu.matmul %1, %2, %cst {dimension_numbers = #tpu.dot_dimension_numbers<[1], [0], [0], [1], [0, 0, 1, 1], [], []>} : vector<8x32xbf16>, vector<32x32xbf16>, vector<8x32xf32> -> vector<8x32xf32>
    %c0_4 = arith.constant 0 : index
    %c0_5 = arith.constant 0 : index
    %c0_6 = arith.constant 0 : index
    %4 = vector.load %arg2[%c0_4, %c0_5, %c0_6] : memref<1x1x32xbf16, #tpu.memory_space<vmem>>, vector<1x1x32xbf16>
    %5 = vector.shape_cast %4 : vector<1x1x32xbf16> to vector<1x32xbf16>
    %c0_7 = arith.constant 0 : index
    %c0_8 = arith.constant 0 : index
    %6 = vector.load %arg5[%c0_7, %c0_8] : memref<32x32xbf16, #tpu.memory_space<vmem>>, vector<32x32xbf16>
    %cst_9 = arith.constant dense<0.000000e+00> : vector<1x32xf32>
    %7 = tpu.matmul %5, %6, %cst_9 {dimension_numbers = #tpu.dot_dimension_numbers<[1], [0], [0], [1], [0, 0, 1, 1], [], []>} : vector<1x32xbf16>, vector<32x32xbf16>, vector<1x32xf32> -> vector<1x32xf32>
    %c0_10 = arith.constant 0 : index
    %c0_11 = arith.constant 0 : index
    %8 = vector.load %arg6[%c0_10, %c0_11] : memref<1x32xf32, #tpu.memory_space<vmem>>, vector<1x32xf32>
    %9 = arith.addf %7, %8 : vector<1x32xf32>
    %10 = vector.shape_cast %9 : vector<1x32xf32> to vector<1x1x32xf32>
    %11 = vector.shape_cast %10 : vector<1x1x32xf32> to vector<1x1x32xf32>
    %12 = vector.broadcast %11 : vector<1x1x32xf32> to vector<1x8x32xf32>
    %13 = vector.shape_cast %12 : vector<1x8x32xf32> to vector<8x32xf32>
    %14 = arith.addf %3, %13 : vector<8x32xf32>
    %cst_12 = arith.constant 0.000000e+00 : f32
    %15 = vector.broadcast %cst_12 : f32 to vector<8x32xf32>
    %16 = arith.cmpf ogt, %14, %15 : vector<8x32xf32>
    %cst_13 = arith.constant 1.000000e-01 : f32
    %17 = vector.broadcast %cst_13 : f32 to vector<8x32xf32>
    %18 = arith.mulf %17, %14 : vector<8x32xf32>
    %19 = arith.select %16, %14, %18 : vector<8x32xi1>, vector<8x32xf32>
    %20 = arith.truncf %19 : vector<8x32xf32> to vector<8x32xbf16>
    %c0_14 = arith.constant 0 : index
    %c0_15 = arith.constant 0 : index
    %21 = vector.load %arg7[%c0_14, %c0_15] : memref<32x32xbf16, #tpu.memory_space<vmem>>, vector<32x32xbf16>
    %cst_16 = arith.constant dense<0.000000e+00> : vector<8x32xf32>
    %22 = tpu.matmul %20, %21, %cst_16 {dimension_numbers = #tpu.dot_dimension_numbers<[1], [0], [0], [1], [0, 0, 1, 1], [], []>} : vector<8x32xbf16>, vector<32x32xbf16>, vector<8x32xf32> -> vector<8x32xf32>
    %c0_17 = arith.constant 0 : index
    %c0_18 = arith.constant 0 : index
    %23 = vector.load %arg8[%c0_17, %c0_18] : memref<1x32xf32, #tpu.memory_space<vmem>>, vector<1x32xf32>
    %24 = vector.broadcast %23 : vector<1x32xf32> to vector<8x32xf32>
    %25 = arith.addf %22, %24 : vector<8x32xf32>
    %cst_19 = arith.constant 0.000000e+00 : f32
    %26 = vector.broadcast %cst_19 : f32 to vector<8x32xf32>
    %27 = arith.cmpf ogt, %25, %26 : vector<8x32xf32>
    %cst_20 = arith.constant 1.000000e-01 : f32
    %28 = vector.broadcast %cst_20 : f32 to vector<8x32xf32>
    %29 = arith.mulf %28, %25 : vector<8x32xf32>
    %30 = arith.select %27, %25, %29 : vector<8x32xi1>, vector<8x32xf32>
    %c0_21 = arith.constant 0 : index
    %c0_22 = arith.constant 0 : index
    %31 = vector.load %arg9[%c0_21, %c0_22] : memref<1x32xf32, #tpu.memory_space<vmem>>, vector<1x32xf32>
    %32 = vector.broadcast %31 : vector<1x32xf32> to vector<8x32xf32>
    %33 = arith.mulf %30, %32 : vector<8x32xf32>
    %cst_23 = arith.constant dense<0.000000e+00> : vector<8xf32>
    %34 = vector.multi_reduction <add>, %33, %cst_23 [1] : vector<8x32xf32> to vector<8xf32>
    %35 = vector.shape_cast %34 : vector<8xf32> to vector<8x1xf32>
    %36 = vector.shape_cast %35 : vector<8x1xf32> to vector<1x8x1xf32>
    %c0_24 = arith.constant 0 : index
    %c0_25 = arith.constant 0 : index
    %c0_26 = arith.constant 0 : index
    %37 = vector.load %arg3[%c0_24, %c0_25, %c0_26] : memref<1x8x1xf32, #tpu.memory_space<vmem>>, vector<1x8x1xf32>
    %38 = arith.addf %36, %37 : vector<1x8x1xf32>
    %cst_27 = arith.constant dense<0xFF800000> : vector<1x1xf32>
    %39 = vector.multi_reduction <maximumf>, %38, %cst_27 [1] : vector<1x8x1xf32> to vector<1x1xf32>
    %40 = vector.shape_cast %39 : vector<1x1xf32> to vector<1x1x1xf32>
    %41 = vector.broadcast %40 : vector<1x1x1xf32> to vector<1x8x1xf32>
    %42 = arith.subf %38, %41 : vector<1x8x1xf32>
    %43 = math.exp %42 : vector<1x8x1xf32>
    %cst_28 = arith.constant dense<0.000000e+00> : vector<1x1xf32>
    %44 = vector.multi_reduction <add>, %43, %cst_28 [1] : vector<1x8x1xf32> to vector<1x1xf32>
    %45 = vector.shape_cast %44 : vector<1x1xf32> to vector<1x1x1xf32>
    %46 = tpu.reciprocal %45 {approx = true} : vector<1x1x1xf32> -> vector<1x1x1xf32>
    %47 = vector.broadcast %46 : vector<1x1x1xf32> to vector<1x8x1xf32>
    %48 = arith.mulf %43, %47 : vector<1x8x1xf32>
    %49 = arith.extf %0 : vector<1x8x32xbf16> to vector<1x8x32xf32>
    %50 = vector.broadcast %48 : vector<1x8x1xf32> to vector<1x8x32xf32>
    %51 = arith.mulf %50, %49 : vector<1x8x32xf32>
    %cst_29 = arith.constant dense<0.000000e+00> : vector<1x32xf32>
    %52 = vector.multi_reduction <add>, %51, %cst_29 [1] : vector<1x8x32xf32> to vector<1x32xf32>
    %53 = vector.shape_cast %52 : vector<1x32xf32> to vector<1x1x32xf32>
    %c0_30 = arith.constant 0 : index
    %c0_31 = arith.constant 0 : index
    %c0_32 = arith.constant 0 : index
    %54 = vector.load %arg10[%c0_30, %c0_31, %c0_32] : memref<1x1x32xf32, #tpu.memory_space<vmem>>, vector<1x1x32xf32>
    tpu.vector_store %arg10[%c0_30, %c0_31, %c0_32], %53 {strides = array<i32>} : memref<1x1x32xf32, #tpu.memory_space<vmem>>, vector<1x1x32xf32>,
    return
  }
  func.func @transform_0(%arg0: i32) -> (i32, i32, i32) {
    %c0_i32 = arith.constant 0 : i32
    %c0_i32_0 = arith.constant 0 : i32
    %c0_i32_1 = arith.constant 0 : i32
    return %arg0, %c0_i32, %c0_i32_0 : i32, i32, i32
  }
  func.func @transform_1(%arg0: i32) -> (i32, i32, i32) {
    %c0_i32 = arith.constant 0 : i32
    %c0_i32_0 = arith.constant 0 : i32
    %c0_i32_1 = arith.constant 0 : i32
    return %arg0, %c0_i32, %c0_i32_0 : i32, i32, i32
  }
  func.func @transform_2(%arg0: i32) -> (i32, i32, i32) {
    %c0_i32 = arith.constant 0 : i32
    %c0_i32_0 = arith.constant 0 : i32
    %c0_i32_1 = arith.constant 0 : i32
    return %arg0, %c0_i32, %c0_i32_0 : i32, i32, i32
  }
  func.func @transform_3(%arg0: i32) -> (i32, i32) {
    %c0_i32 = arith.constant 0 : i32
    %c0_i32_0 = arith.constant 0 : i32
    %c0_i32_1 = arith.constant 0 : i32
    return %c0_i32, %c0_i32_0 : i32, i32
  }
  func.func @transform_4(%arg0: i32) -> (i32, i32) {
    %c0_i32 = arith.constant 0 : i32
    %c0_i32_0 = arith.constant 0 : i32
    %c0_i32_1 = arith.constant 0 : i32
    return %c0_i32, %c0_i32_0 : i32, i32
  }
  func.func @transform_5(%arg0: i32) -> (i32, i32) {
    %c0_i32 = arith.constant 0 : i32
    %c0_i32_0 = arith.constant 0 : i32
    %c0_i32_1 = arith.constant 0 : i32
    return %c0_i32, %c0_i32_0 : i32, i32
  }
  func.func @transform_6(%arg0: i32) -> (i32, i32) {
    %c0_i32 = arith.constant 0 : i32
    %c0_i32_0 = arith.constant 0 : i32
    %c0_i32_1 = arith.constant 0 : i32
    return %c0_i32, %c0_i32_0 : i32, i32
  }
  func.func @transform_7(%arg0: i32) -> (i32, i32) {
    %c0_i32 = arith.constant 0 : i32
    %c0_i32_0 = arith.constant 0 : i32
    %c0_i32_1 = arith.constant 0 : i32
    return %c0_i32, %c0_i32_0 : i32, i32
  }
  func.func @transform_8(%arg0: i32) -> (i32, i32) {
    %c0_i32 = arith.constant 0 : i32
    %c0_i32_0 = arith.constant 0 : i32
    %c0_i32_1 = arith.constant 0 : i32
    return %c0_i32, %c0_i32_0 : i32, i32
  }
  func.func @transform_9(%arg0: i32) -> (i32, i32, i32) {
    %c0_i32 = arith.constant 0 : i32
    %c0_i32_0 = arith.constant 0 : i32
    %c0_i32_1 = arith.constant 0 : i32
    return %arg0, %c0_i32, %c0_i32_0 : i32, i32, i32
  }
}

</mosaic_0001>

<llo_original>
// kernel: tpu_custom_call.1
$region0: #{tpu_custom_call.1}
  #allocation0 [shape = 'u32[]', space=smem, size = 0x4, offset = 0x4, fixed_abs, tag = 'smem constant byte address 0x4 - core index']
  #allocation1 [shape = 'u32[72,128]{1,0:T(1,128)}', space=vmem, size = 0x9000, scoped, tag = 'internal scratch']
  %s0 = inlined_call_operand.hbm [shape: bf16[2,8,32], index: 0, kind: input, shape index: {}]
  %s1 = inlined_call_operand.vmem [shape: bf16[2,1,32], index: 1, kind: input, shape index: {}]
  %s2 = inlined_call_operand.vmem [shape: f32[2,8,1], index: 2, kind: input, shape index: {}]
  %s3 = inlined_call_operand.vmem [shape: bf16[32,32], index: 3, kind: input, shape index: {}]
  %s4 = inlined_call_operand.hbm [shape: bf16[32,32], index: 4, kind: input, shape index: {}]
  %s5 = inlined_call_operand.vmem [shape: f32[1,32], index: 5, kind: input, shape index: {}]
  %s6 = inlined_call_operand.hbm [shape: bf16[32,32], index: 6, kind: input, shape index: {}]
  %s7 = inlined_call_operand.vmem [shape: f32[1,32], index: 7, kind: input, shape index: {}]
  %s8 = inlined_call_operand.vmem [shape: f32[1,32], index: 8, kind: input, shape index: {}]
  %s9 = inlined_call_operand.hbm [shape: f32[2,1,32], index: 9, kind: output, shape index: {}]
  %s10 = sld [smem:[#allocation0]]
  $region81: #{tpu_custom_call.1} parent=0
    _
  %s12 = ssub.s32 1, %s10
  %s13 = scalar_select 0, %s12, %s10
  $region1: #{tpu_custom_call.1} parent=0
    #allocation2 [shape = 'u8[4096]{0}', space=vmem, size = 0x1000, scoped, tag = 'input window, operand 0']
    #allocation3 [shape = 's32[2]{0}', space=sflag, size = 0x8, scoped, tag = 'scoped memory for tpu_custom_call.1']
    #allocation4 [shape = 's32[2]{0}', space=sflag, size = 0x8, scoped, tag = 'scoped memory for tpu_custom_call.1']
    #allocation5 [shape = 'u8[8192]{0}', space=vmem, size = 0x2000, scoped, tag = 'input window, operand 4, single buffered']
    #allocation6 [shape = 's32[1]{0}', space=sflag, size = 0x4, scoped, tag = 'scoped memory for tpu_custom_call.1']
    #allocation7 [shape = 'u8[8192]{0}', space=vmem, size = 0x2000, scoped, tag = 'input window, operand 6, single buffered']
    #allocation8 [shape = 'u8[1024]{0}', space=vmem, size = 0x400, scoped, tag = 'output window, operand 0']
    %14 = vsyncpa [#allocation3], 0
    %s15 = scalar_lea.sflag [#allocation3], 1
    %16 = vsyncpa %s15, 0
    %17 = vsyncpa [#allocation6], 0
    %18 = vsyncpa [#allocation4], 0
    %s19 = scalar_lea.sflag [#allocation4], 1
    %20 = vsyncpa %s19, 0
    loop: start=0, step=1, limit=4
    $region2: #{tpu_custom_call.1} parent=1 // loop_pre_header
      _
    $region3: #{tpu_custom_call.1} parent=1 // loop_header
      %s22 = sphi 0, %s26
      %p23 = scmp.ge.s32.totalorder %s22, 4
      %s32 = sphi 0, %s34
      %s35 = sphi 0, %s32
      %s36 = sphi 0, %s35
      %s52 = sphi 0, %s36
      %s58 = sphi 0, %s60
      %s61 = sphi 0, %s58
      %s62 = sphi 0, %s61
      %s78 = sphi 0, %s62
      %s84 = sphi 0, %s86
      %s87 = sphi 0, %s84
      %s88 = sphi 0, %s87
      %s104 = sphi 0, %s88
      %s108 = sphi 0, %s108
      %s110 = sphi 0, %s108
      %s111 = sphi 0, %s110
      %s125 = sphi 0, %s111
      %s129 = sphi 0, %s129
      %s131 = sphi 0, %s129
      %s132 = sphi 0, %s131
      %s146 = sphi 0, %s132
      %s150 = sphi 0, %s150
      %s152 = sphi 0, %s150
      %s153 = sphi 0, %s152
      %s167 = sphi 0, %s153
      %s171 = sphi 0, %s171
      %s173 = sphi 0, %s171
      %s174 = sphi 0, %s173
      %s188 = sphi 0, %s174
      %s192 = sphi 0, %s192
      %s194 = sphi 0, %s192
      %s195 = sphi 0, %s194
      %s209 = sphi 0, %s195
      %s213 = sphi 0, %s213
      %s215 = sphi 0, %s213
      %s216 = sphi 0, %s215
      %s230 = sphi 0, %s216
      %s236 = sphi 0, %s238
      %s239 = sphi 0, %s236
      %s240 = sphi 0, %s239
      %s256 = sphi 0, %s240
    $region4: #{tpu_custom_call.1} parent=1 // loop_header_branch
      %25 = sbr.rel (%p23) target = $region8
    $region5: #{tpu_custom_call.1} parent=1 // loop_body
      %s27 = ssub.s32 %s22, 1
      %s28 = ssub.s32 %s22, 2
      %s29 = sadd.s32 %s22, 1
      %s30 = ssub.s32 %s22, %s29
      %p31 = scmp.eq.s32.totalorder %s30, 0
      %s33 = sadd.s32 %s32, 1
      %s34 = scalar_select %p31, %s32, %s33
      %p37 = pneg %p31
      %p38 = scmp.eq.s32.totalorder %s22, 1
      %p39 = por %p37, %p38
      %p40 = scmp.ne.s32.totalorder %s32, %s35
      %p41 = scmp.eq.s32.totalorder %s22, 0
      %p42 = por %p40, %p41
      %p43 = scmp.ne.s32.totalorder %s32, %s35
      %p44 = scmp.eq.s32.totalorder %s27, 1
      %p45 = por %p43, %p44
      %p46 = scmp.ne.s32.totalorder %s35, %s36
      %p47 = scmp.eq.s32.totalorder %s27, 0
      %p48 = por %p46, %p47
      %p49 = scmp.ne.s32.totalorder %s35, %s36
      %p50 = scmp.eq.s32.totalorder %s28, 1
      %p51 = por %p49, %p50
      %p53 = scmp.ne.s32.totalorder %s36, %s52
      %p54 = scmp.eq.s32.totalorder %s28, 0
      %p55 = por %p53, %p54
      %s56 = ssub.s32 %s22, %s29
      %p57 = scmp.eq.s32.totalorder %s56, 0
      %s59 = sadd.s32 %s58, 1
      %s60 = scalar_select %p57, %s58, %s59
      %p63 = pneg %p57
      %p64 = scmp.eq.s32.totalorder %s22, 1
      %p65 = por %p63, %p64
      %p66 = scmp.ne.s32.totalorder %s58, %s61
      %p67 = scmp.eq.s32.totalorder %s22, 0
      %p68 = por %p66, %p67
      %p69 = scmp.ne.s32.totalorder %s58, %s61
      %p70 = scmp.eq.s32.totalorder %s27, 1
      %p71 = por %p69, %p70
      %p72 = scmp.ne.s32.totalorder %s61, %s62
      %p73 = scmp.eq.s32.totalorder %s27, 0
      %p74 = por %p72, %p73
      %p75 = scmp.ne.s32.totalorder %s61, %s62
      %p76 = scmp.eq.s32.totalorder %s28, 1
      %p77 = por %p75, %p76
      %p79 = scmp.ne.s32.totalorder %s62, %s78
      %p80 = scmp.eq.s32.totalorder %s28, 0
      %p81 = por %p79, %p80
      %s82 = ssub.s32 %s22, %s29
      %p83 = scmp.eq.s32.totalorder %s82, 0
      %s85 = sadd.s32 %s84, 1
      %s86 = scalar_select %p83, %s84, %s85
      %p89 = pneg %p83
      %p90 = scmp.eq.s32.totalorder %s22, 1
      %p91 = por %p89, %p90
      %p92 = scmp.ne.s32.totalorder %s84, %s87
      %p93 = scmp.eq.s32.totalorder %s22, 0
      %p94 = por %p92, %p93
      %p95 = scmp.ne.s32.totalorder %s84, %s87
      %p96 = scmp.eq.s32.totalorder %s27, 1
      %p97 = por %p95, %p96
      %p98 = scmp.ne.s32.totalorder %s87, %s88
      %p99 = scmp.eq.s32.totalorder %s27, 0
      %p100 = por %p98, %p99
      %p101 = scmp.ne.s32.totalorder %s87, %s88
      %p102 = scmp.eq.s32.totalorder %s28, 1
      %p103 = por %p101, %p102
      %p105 = scmp.ne.s32.totalorder %s88, %s104
      %p106 = scmp.eq.s32.totalorder %s28, 0
      %p107 = por %p105, %p106
      %s109 = sadd.s32 %s108, 1
      %p112 = scmp.eq.s32.totalorder %s22, 1
      %p113 = scmp.ne.s32.totalorder %s108, %s110
      %p114 = scmp.eq.s32.totalorder %s22, 0
      %p115 = por %p113, %p114
      %p116 = scmp.ne.s32.totalorder %s108, %s110
      %p117 = scmp.eq.s32.totalorder %s27, 1
      %p118 = por %p116, %p117
      %p119 = scmp.ne.s32.totalorder %s110, %s111
      %p120 = scmp.eq.s32.totalorder %s27, 0
      %p121 = por %p119, %p120
      %p122 = scmp.ne.s32.totalorder %s110, %s111
      %p123 = scmp.eq.s32.totalorder %s28, 1
      %p124 = por %p122, %p123
      %p126 = scmp.ne.s32.totalorder %s111, %s125
      %p127 = scmp.eq.s32.totalorder %s28, 0
      %p128 = por %p126, %p127
      %s130 = sadd.s32 %s129, 1
      %p133 = scmp.eq.s32.totalorder %s22, 1
      %p134 = scmp.ne.s32.totalorder %s129, %s131
      %p135 = scmp.eq.s32.totalorder %s22, 0
      %p136 = por %p134, %p135
      %p137 = scmp.ne.s32.totalorder %s129, %s131
      %p138 = scmp.eq.s32.totalorder %s27, 1
      %p139 = por %p137, %p138
      %p140 = scmp.ne.s32.totalorder %s131, %s132
      %p141 = scmp.eq.s32.totalorder %s27, 0
      %p142 = por %p140, %p141
      %p143 = scmp.ne.s32.totalorder %s131, %s132
      %p144 = scmp.eq.s32.totalorder %s28, 1
      %p145 = por %p143, %p144
      %p147 = scmp.ne.s32.totalorder %s132, %s146
      %p148 = scmp.eq.s32.totalorder %s28, 0
      %p149 = por %p147, %p148
      %s151 = sadd.s32 %s150, 1
      %p154 = scmp.eq.s32.totalorder %s22, 1
      %p155 = scmp.ne.s32.totalorder %s150, %s152
      %p156 = scmp.eq.s32.totalorder %s22, 0
      %p157 = por %p155, %p156
      %p158 = scmp.ne.s32.totalorder %s150, %s152
      %p159 = scmp.eq.s32.totalorder %s27, 1
      %p160 = por %p158, %p159
      %p161 = scmp.ne.s32.totalorder %s152, %s153
      %p162 = scmp.eq.s32.totalorder %s27, 0
      %p163 = por %p161, %p162
      %p164 = scmp.ne.s32.totalorder %s152, %s153
      %p165 = scmp.eq.s32.totalorder %s28, 1
      %p166 = por %p164, %p165
      %p168 = scmp.ne.s32.totalorder %s153, %s167
      %p169 = scmp.eq.s32.totalorder %s28, 0
      %p170 = por %p168, %p169
      %s172 = sadd.s32 %s171, 1
      %p175 = scmp.eq.s32.totalorder %s22, 1
      %p176 = scmp.ne.s32.totalorder %s171, %s173
      %p177 = scmp.eq.s32.totalorder %s22, 0
      %p178 = por %p176, %p177
      %p179 = scmp.ne.s32.totalorder %s171, %s173
      %p180 = scmp.eq.s32.totalorder %s27, 1
      %p181 = por %p179, %p180
      %p182 = scmp.ne.s32.totalorder %s173, %s174
      %p183 = scmp.eq.s32.totalorder %s27, 0
      %p184 = por %p182, %p183
      %p185 = scmp.ne.s32.totalorder %s173, %s174
      %p186 = scmp.eq.s32.totalorder %s28, 1
      %p187 = por %p185, %p186
      %p189 = scmp.ne.s32.totalorder %s174, %s188
      %p190 = scmp.eq.s32.totalorder %s28, 0
      %p191 = por %p189, %p190
      %s193 = sadd.s32 %s192, 1
      %p196 = scmp.eq.s32.totalorder %s22, 1
      %p197 = scmp.ne.s32.totalorder %s192, %s194
      %p198 = scmp.eq.s32.totalorder %s22, 0
      %p199 = por %p197, %p198
      %p200 = scmp.ne.s32.totalorder %s192, %s194
      %p201 = scmp.eq.s32.totalorder %s27, 1
      %p202 = por %p200, %p201
      %p203 = scmp.ne.s32.totalorder %s194, %s195
      %p204 = scmp.eq.s32.totalorder %s27, 0
      %p205 = por %p203, %p204
      %p206 = scmp.ne.s32.totalorder %s194, %s195
      %p207 = scmp.eq.s32.totalorder %s28, 1
      %p208 = por %p206, %p207
      %p210 = scmp.ne.s32.totalorder %s195, %s209
      %p211 = scmp.eq.s32.totalorder %s28, 0
      %p212 = por %p210, %p211
      %s214 = sadd.s32 %s213, 1
      %p217 = scmp.eq.s32.totalorder %s22, 1
      %p218 = scmp.ne.s32.totalorder %s213, %s215
      %p219 = scmp.eq.s32.totalorder %s22, 0
      %p220 = por %p218, %p219
      %p221 = scmp.ne.s32.totalorder %s213, %s215
      %p222 = scmp.eq.s32.totalorder %s27, 1
      %p223 = por %p221, %p222
      %p224 = scmp.ne.s32.totalorder %s215, %s216
      %p225 = scmp.eq.s32.totalorder %s27, 0
      %p226 = por %p224, %p225
      %p227 = scmp.ne.s32.totalorder %s215, %s216
      %p228 = scmp.eq.s32.totalorder %s28, 1
      %p229 = por %p227, %p228
      %p231 = scmp.ne.s32.totalorder %s216, %s230
      %p232 = scmp.eq.s32.totalorder %s28, 0
      %p233 = por %p231, %p232
      %s234 = ssub.s32 %s22, %s29
      %p235 = scmp.eq.s32.totalorder %s234, 0
      %s237 = sadd.s32 %s236, 1
      %s238 = scalar_select %p235, %s236, %s237
      %p241 = pneg %p235
      %p242 = scmp.eq.s32.totalorder %s22, 1
      %p243 = por %p241, %p242
      %p244 = scmp.ne.s32.totalorder %s236, %s239
      %p245 = scmp.eq.s32.totalorder %s22, 0
      %p246 = por %p244, %p245
      %p247 = scmp.ne.s32.totalorder %s236, %s239
      %p248 = scmp.eq.s32.totalorder %s27, 1
      %p249 = por %p247, %p248
      %p250 = scmp.ne.s32.totalorder %s239, %s240
      %p251 = scmp.eq.s32.totalorder %s27, 0
      %p252 = por %p250, %p251
      %p253 = scmp.ne.s32.totalorder %s239, %s240
      %p254 = scmp.eq.s32.totalorder %s28, 1
      %p255 = por %p253, %p254
      %p257 = scmp.ne.s32.totalorder %s240, %s256
      %p258 = scmp.eq.s32.totalorder %s28, 0
      %p259 = por %p257, %p258
      %p260 = scmp.le.s32.totalorder 1, %s22
      %p261 = scmp.lt.s32.totalorder %s22, 3
      %p262 = pnand %p260, %p261
      %p263 = pneg %p262
      // Predicated region
      $region9: #{tpu_custom_call.1} parent=5 // pred_check
        _
      $region10: #{tpu_custom_call.1} parent=5 // pred_check_branch
        %265 = sbr.rel (%p262) target = $region12
      $region11: #{tpu_custom_call.1} parent=5 // pred_region
        %s266 = ssub.s32 %s22, 1
        // Predicated region
        $region13: #{tpu_custom_call.1} parent=11 // pred_check
          %p267 = pneg %p121
        $region14: #{tpu_custom_call.1} parent=11 // pred_check_branch
          %269 = sbr.rel (%p267) target = $region16
        $region15: #{tpu_custom_call.1} parent=11 // pred_region
          _
        $region16: #{tpu_custom_call.1} parent=11 // pred_fallthru
          _
        // Predicated region
        $region17: #{tpu_custom_call.1} parent=11 // pred_check
          %p270 = pneg %p142
        $region18: #{tpu_custom_call.1} parent=11 // pred_check_branch
          %272 = sbr.rel (%p270) target = $region20
        $region19: #{tpu_custom_call.1} parent=11 // pred_region
          %274 = vsyncadd [#allocation6], 0
          %s275 = sshll.u32 %s4, 4
          %s276 = int_to_ptr.hbm [resolvable:$true] %s275
          %s277 = sshll.u32 [#allocation5], 4
          %s278 = int_to_ptr.vmem [resolvable:$true] %s277
          %283 = dma.hbm_to_vmem [thread:$0]  %s276, 256, %s278, [#allocation6], 64, 64, 4
        $region20: #{tpu_custom_call.1} parent=11 // pred_fallthru
          _
        // Predicated region
        $region21: #{tpu_custom_call.1} parent=11 // pred_check
          %p284 = pneg %p163
        $region22: #{tpu_custom_call.1} parent=11 // pred_check_branch
          %286 = sbr.rel (%p284) target = $region24
        $region23: #{tpu_custom_call.1} parent=11 // pred_region
          _
        $region24: #{tpu_custom_call.1} parent=11 // pred_fallthru
          _
        // Predicated region
        $region25: #{tpu_custom_call.1} parent=11 // pred_check
          %p287 = pneg %p184
        $region26: #{tpu_custom_call.1} parent=11 // pred_check_branch
          %289 = sbr.rel (%p287) target = $region28
        $region27: #{tpu_custom_call.1} parent=11 // pred_region
          %291 = vsyncadd [#allocation6], 0
          %s292 = sshll.u32 %s6, 4
          %s293 = int_to_ptr.hbm [resolvable:$true] %s292
          %s294 = sshll.u32 [#allocation7], 4
          %s295 = int_to_ptr.vmem [resolvable:$true] %s294
          %300 = dma.hbm_to_vmem [thread:$0]  %s293, 256, %s295, [#allocation6], 64, 64, 4
        $region28: #{tpu_custom_call.1} parent=11 // pred_fallthru
          _
        // Predicated region
        $region29: #{tpu_custom_call.1} parent=11 // pred_check
          %p301 = pneg %p205
        $region30: #{tpu_custom_call.1} parent=11 // pred_check_branch
          %303 = sbr.rel (%p301) target = $region32
        $region31: #{tpu_custom_call.1} parent=11 // pred_region
          _
        $region32: #{tpu_custom_call.1} parent=11 // pred_fallthru
          _
        // Predicated region
        $region33: #{tpu_custom_call.1} parent=11 // pred_check
          %p304 = pneg %p226
        $region34: #{tpu_custom_call.1} parent=11 // pred_check_branch
          %306 = sbr.rel (%p304) target = $region36
        $region35: #{tpu_custom_call.1} parent=11 // pred_region
          _
        $region36: #{tpu_custom_call.1} parent=11 // pred_fallthru
          _
      $region12: #{tpu_custom_call.1} parent=5 // pred_fallthru
        _
      %p307 = scmp.lt.s32.totalorder %s22, 2
      // Predicated region
      $region37: #{tpu_custom_call.1} parent=5 // pred_check
        %p308 = pneg %p307
      $region38: #{tpu_custom_call.1} parent=5 // pred_check_branch
        %310 = sbr.rel (%p308) target = $region40
      $region39: #{tpu_custom_call.1} parent=5 // pred_region
        // Predicated region
        $region41: #{tpu_custom_call.1} parent=39 // pred_check
          %p311 = pneg %p42
        $region42: #{tpu_custom_call.1} parent=39 // pred_check_branch
          %313 = sbr.rel (%p311) target = $region44
        $region43: #{tpu_custom_call.1} parent=39 // pred_region
          %s314 = sand.u32 %s32, 1
          %s315 = scalar_lea.sflag [#allocation3], %s314
          %s316 = sand.u32 %s32, 1
          %s317 = smul.addr %s316, 4
          %s318 = scalar_lea.vmem [#allocation2], %s317
          %320 = vsyncadd %s315, 0
          %s321 = smul.addr %s22, 4
          %s322 = scalar_lea.hbm %s0, %s321
          %s324 = sshll.u32 %s322, 4
          %s325 = int_to_ptr.hbm [resolvable:$true] %s324
          %s326 = sshll.u32 %s318, 4
          %s327 = int_to_ptr.vmem [resolvable:$true] %s326
          %329 = dma.hbm_to_vmem [thread:$0]  %s325, 64, %s327, %s315
        $region44: #{tpu_custom_call.1} parent=39 // pred_fallthru
          _
        // Predicated region
        $region45: #{tpu_custom_call.1} parent=39 // pred_check
          %p330 = pneg %p68
        $region46: #{tpu_custom_call.1} parent=39 // pred_check_branch
          %332 = sbr.rel (%p330) target = $region48
        $region47: #{tpu_custom_call.1} parent=39 // pred_region
          %p333 = scmp.lt.s32.totalorder %s22, 1
          %s334 = scalar_select %p333, %s22, 1
          %s335 = scalar_lea.vmem %s1, %s334
        $region48: #{tpu_custom_call.1} parent=39 // pred_fallthru
          _
        // Predicated region
        $region49: #{tpu_custom_call.1} parent=39 // pred_check
          %p336 = pneg %p94
        $region50: #{tpu_custom_call.1} parent=39 // pred_check_branch
          %338 = sbr.rel (%p336) target = $region52
        $region51: #{tpu_custom_call.1} parent=39 // pred_region
          %p339 = scmp.lt.s32.totalorder %s22, 1
          %s340 = scalar_select %p339, %s22, 1
          %s341 = smul.addr %s340, 8
          %s342 = scalar_lea.vmem %s2, %s341
        $region52: #{tpu_custom_call.1} parent=39 // pred_fallthru
          _
      $region40: #{tpu_custom_call.1} parent=5 // pred_fallthru
        _
      %p343 = scmp.le.s32.totalorder 1, %s22
      %p344 = scmp.lt.s32.totalorder %s22, 3
      %p345 = pnand %p343, %p344
      %p346 = pneg %p345
      // Predicated region
      $region53: #{tpu_custom_call.1} parent=5 // pred_check
        _
      $region54: #{tpu_custom_call.1} parent=5 // pred_check_branch
        %348 = sbr.rel (%p345) target = $region56
      $region55: #{tpu_custom_call.1} parent=5 // pred_region
        %s349 = ssub.s32 %s22, 1
        %s350 = sand.u32 %s35, 1
        %s351 = scalar_lea.sflag [#allocation3], %s350
        %s352 = sand.u32 %s35, 1
        %s353 = smul.addr %s352, 4
        %s354 = scalar_lea.vmem [#allocation2], %s353
        // Predicated region
        $region57: #{tpu_custom_call.1} parent=55 // pred_check
          %p355 = pneg %p48
        $region58: #{tpu_custom_call.1} parent=55 // pred_check_branch
          %357 = sbr.rel (%p355) target = $region60
        $region59: #{tpu_custom_call.1} parent=55 // pred_region
          %359 = dma.done %s351, 64
        $region60: #{tpu_custom_call.1} parent=55 // pred_fallthru
          _
        // Predicated region
        $region61: #{tpu_custom_call.1} parent=55 // pred_check
          %p360 = pneg %p142
        $region62: #{tpu_custom_call.1} parent=55 // pred_check_branch
          %362 = sbr.rel (%p360) target = $region64
        $region63: #{tpu_custom_call.1} parent=55 // pred_region
          %364 = dma.done [#allocation6], 256
        $region64: #{tpu_custom_call.1} parent=55 // pred_fallthru
          _
        // Predicated region
        $region65: #{tpu_custom_call.1} parent=55 // pred_check
          %p365 = pneg %p184
        $region66: #{tpu_custom_call.1} parent=55 // pred_check_branch
          %367 = sbr.rel (%p365) target = $region68
        $region67: #{tpu_custom_call.1} parent=55 // pred_region
          %369 = dma.done [#allocation6], 256
        $region68: #{tpu_custom_call.1} parent=55 // pred_fallthru
          _
        %s370 = sand.u32 %s35, 1
        %s371 = scalar_lea.sflag [#allocation3], %s370
        %s372 = sand.u32 %s35, 1
        %s373 = smul.addr %s372, 4
        %s374 = scalar_lea.vmem [#allocation2], %s373
        %p375 = pneg %p48
        %p376 = pneg %p45
        %p377 = scmp.lt.s32.totalorder %s27, 1
        %s378 = scalar_select %p377, %s27, 1
        %s379 = scalar_lea.vmem %s1, %s378
        %p380 = pneg %p74
        %p381 = pneg %p71
        %p382 = scmp.lt.s32.totalorder %s27, 1
        %s383 = scalar_select %p382, %s27, 1
        %s384 = smul.addr %s383, 8
        %s385 = scalar_lea.vmem %s2, %s384
        %p386 = pneg %p100
        %p387 = pneg %p97
        %p388 = pneg %p121
        %p389 = pneg %p118
        %p390 = pneg %p142
        %p391 = pneg %p139
        %p392 = pneg %p163
        %p393 = pneg %p160
        %p394 = pneg %p184
        %p395 = pneg %p181
        %p396 = pneg %p205
        %p397 = pneg %p202
        %p398 = pneg %p226
        %p399 = pneg %p223
        %p400 = pneg %p252
        %p401 = pneg %p249
        %s402 = sand.u32 %s239, 1
        %s403 = scalar_lea.sflag [#allocation4], %s402
        %s404 = sand.u32 %s239, 1
        %s405 = scalar_lea.vmem [#allocation8], %s404
        %p406 = scmp.lt.s32.totalorder %s27, 1
        %s407 = scalar_select %p406, %s27, 1
        %s408 = scalar_lea.vmem %s1, %s407
        %p409 = scmp.lt.s32.totalorder %s27, 1
        %s410 = scalar_select %p409, %s27, 1
        %s411 = smul.addr %s410, 8
        %s412 = scalar_lea.vmem %s2, %s411
        %v414 = vld [vmem:[%s354] sm:$0xf]
        %v415 = vld [vmem:[%s3] sm:$0xf]
        %v416 = vld [vmem:[%s3 + $0x4] sm:$0xf]
        %v417 = vld [vmem:[%s3 + $0x8] sm:$0xf]
        %v418 = vld [vmem:[%s3 + $0xc] sm:$0xf]
        %v419 = vld [vmem:[%s408] sm:$0x1]
        %v420 = vld [vmem:[#allocation5] sm:$0xf]
        %v421 = vld [vmem:[#allocation5 + $0x4] sm:$0xf]
        %v422 = vld [vmem:[#allocation5 + $0x8] sm:$0xf]
        %v423 = vld [vmem:[#allocation5 + $0xc] sm:$0xf]
        %v424 = vld [vmem:[%s5] sm:$0x1]
        %v429 = vunpack.c.l.b16 %v420
        %v430 = vunpack.c.l.b16 %v421
        %v431 = vunpack.c.l.b16 %v422
        %v432 = vunpack.c.l.b16 %v423
        %v433 = vpack.c.b16 %v430, %v429
        %v434 = vpack.c.b16 %v432, %v431
        %vm437 = vcmask 261120
        %v439 = vsel %vm437, %v419, 0
        %441 = vmatpush.bf16.msra.mxu0 0
        %442 = vmatpush.bf16.msra.mxu0 0
        %443 = vmatpush.bf16.msra.mxu0 0
        %444 = vmatpush.bf16.msra.mxu0 0
        %445 = vmatpush.bf16.msra.mxu0 0
        %446 = vmatpush.bf16.msra.mxu0 0
        %447 = vmatpush.bf16.msra.mxu0 %v434
        %448 = vmatpush.bf16.msra.mxu0 %v433
        %449 = vmatmul.bf16.gmra.mxu0 %v439
        %v450 = vpop.f32.mrf.mxu0
        %v451 = vadd.f32 %v424, %v450
        %v452 = vpop.f32.mrf.mxu0
        %453 = vdwg.mxu0
        %v454 = vperm.slane %v451, 0
        %v459 = vunpack.c.l.b16 %v415
        %v460 = vunpack.c.l.b16 %v416
        %v461 = vunpack.c.l.b16 %v417
        %v462 = vunpack.c.l.b16 %v418
        %v463 = vpack.c.b16 %v460, %v459
        %v464 = vpack.c.b16 %v462, %v461
        %v468 = vsel %vm437, %v414, 0
        %470 = vmatpush.bf16.msra.mxu0 0
        %471 = vmatpush.bf16.msra.mxu0 0
        %472 = vmatpush.bf16.msra.mxu0 0
        %473 = vmatpush.bf16.msra.mxu0 0
        %474 = vmatpush.bf16.msra.mxu0 0
        %475 = vmatpush.bf16.msra.mxu0 0
        %476 = vmatpush.bf16.msra.mxu0 %v464
        %477 = vmatpush.bf16.msra.mxu0 %v463
        %478 = vmatmul.bf16.gmra.mxu0 %v468
        %v479 = vpop.f32.mrf.mxu0
        %v480 = vadd.f32 %v454, %v479
        %v481 = vpop.f32.mrf.mxu0
        %482 = vdwg.mxu0
        %vm483 = vcmp.gt.f32.partialorder %v480, 0.0
        %v484 = vmul.f32 %v480, 0.1
        %v485 = vsel %vm483, %v480, %v484
        %v486 = vpack.c.bf16 %v485, %v485
        %v487 = vld [vmem:[#allocation7] sm:$0xf]
        %v488 = vld [vmem:[#allocation7 + $0x4] sm:$0xf]
        %v489 = vld [vmem:[#allocation7 + $0x8] sm:$0xf]
        %v490 = vld [vmem:[#allocation7 + $0xc] sm:$0xf]
        %v491 = vld [vmem:[%s7] sm:$0x1]
        %v493 = vperm.slane %v491, 0
        %v499 = vunpack.c.l.b16 %v487
        %v500 = vunpack.c.l.b16 %v488
        %v501 = vunpack.c.l.b16 %v489
        %v502 = vunpack.c.l.b16 %v490
        %v503 = vpack.c.b16 %v500, %v499
        %v504 = vpack.c.b16 %v502, %v501
        %v508 = vsel %vm437, %v486, 0
        %510 = vmatpush.bf16.msra.mxu0 0
        %511 = vmatpush.bf16.msra.mxu0 0
        %512 = vmatpush.bf16.msra.mxu0 0
        %513 = vmatpush.bf16.msra.mxu0 0
        %514 = vmatpush.bf16.msra.mxu0 0
        %515 = vmatpush.bf16.msra.mxu0 0
        %516 = vmatpush.bf16.msra.mxu0 %v504
        %517 = vmatpush.bf16.msra.mxu0 %v503
        %518 = vmatmul.bf16.gmra.mxu0 %v508
        %v519 = vpop.f32.mrf.mxu0
        %v520 = vadd.f32 %v493, %v519
        %v521 = vpop.f32.mrf.mxu0
        %522 = vdwg.mxu0
        %vm523 = vcmp.gt.f32.partialorder %v520, 0.0
        %v524 = vmul.f32 %v520, 0.1
        %v525 = vsel %vm523, %v520, %v524
        %v526 = vld [vmem:[%s8] sm:$0x1]
        %v528 = vperm.slane %v526, 0
        %v530 = vmul.f32 %v525, %v528
        %v531 = vsel %vm437, %v530, 0.0
        %532 = vadd.xlane.f32.xlu0 %v531
        %v533 = vpop.xlane.xlu0 %532
        %v534 = vld [vmem:[%s412] sm:$0xff]
        %v535 = vadd.f32 %v533, %v534
        %vm536 = vcmask 7168
        %v537 = vsel %vm536, %v535, -inf
        %v538 = vrot.slane %v537, 4
        %v539 = vmax.f32 %v537, %v538
        %v540 = vrot.slane %v539, 2
        %v541 = vmax.f32 %v539, %v540
        %v542 = vrot.slane %v541, 1
        %v543 = vmax.f32 %v541, %v542
        %v544 = vsub.f32 %v535, %v543
        %v545 = vmul.f32 %v544, 1.442695
        %v546 = vpow.pop %v545
        %v547 = vsel %vm536, %v546, 0.0
        %v548 = vrot.slane %v547, 4
        %v549 = vadd.f32 %v547, %v548
        %v550 = vrot.slane %v549, 2
        %v551 = vadd.f32 %v549, %v550
        %v552 = vrot.slane %v551, 1
        %v553 = vadd.f32 %v551, %v552
        %v554 = vrcp.pop %v553
        %v555 = vmul.f32 %v546, %v554
        %v556 = vunpack.c.l.bf16 %v414
        %558 = vset.pattern.permute.xlu0 0
        %559 = vperm.xlu0 %558, %v555
        %v560 = vpop.permute.xlu0 %559
        %v562 = vmul.f32 %v560, %v556
        %v563 = vsel %vm437, %v562, 0.0
        %v564 = vrot.slane %v563, 4
        %v565 = vadd.f32 %v563, %v564
        %v566 = vrot.slane %v565, 2
        %v567 = vadd.f32 %v565, %v566
        %v568 = vrot.slane %v567, 1
        %v569 = vadd.f32 %v567, %v568
        %vm570 = vcmask 253952
        %571 = vst.msk [vmem:[%s405] sm:$0x1] %vm570, %v569
        %s572 = sand.u32 %s239, 1
        %s573 = scalar_lea.sflag [#allocation4], %s572
        %s574 = sand.u32 %s239, 1
        %s575 = scalar_lea.vmem [#allocation8], %s574
        // Predicated region
        $region69: #{tpu_custom_call.1} parent=55 // pred_check
          %p576 = pneg %p249
        $region70: #{tpu_custom_call.1} parent=55 // pred_check_branch
          %578 = sbr.rel (%p576) target = $region72
        $region71: #{tpu_custom_call.1} parent=55 // pred_region
          %580 = vsyncadd %s573, 0
          %s581 = scalar_lea.hbm %s9, %s27
          %s583 = sshll.u32 %s575, 4
          %s584 = int_to_ptr.vmem [resolvable:$true] %s583
          %s585 = sshll.u32 %s581, 4
          %s586 = int_to_ptr.hbm [resolvable:$true] %s585
          %588 = dma.vmem_to_hbm [thread:$0]  %s584, 16, %s586, %s573
        $region72: #{tpu_custom_call.1} parent=55 // pred_fallthru
          _
      $region56: #{tpu_custom_call.1} parent=5 // pred_fallthru
        _
      %p589 = scmp.le.s32.totalorder 2, %s22
      // Predicated region
      $region73: #{tpu_custom_call.1} parent=5 // pred_check
        %p590 = pneg %p589
      $region74: #{tpu_custom_call.1} parent=5 // pred_check_branch
        %592 = sbr.rel (%p590) target = $region76
      $region75: #{tpu_custom_call.1} parent=5 // pred_region
        %s593 = ssub.s32 %s22, 2
        // Predicated region
        $region77: #{tpu_custom_call.1} parent=75 // pred_check
          %p594 = pneg %p255
        $region78: #{tpu_custom_call.1} parent=75 // pred_check_branch
          %596 = sbr.rel (%p594) target = $region80
        $region79: #{tpu_custom_call.1} parent=75 // pred_region
          %s597 = sand.u32 %s240, 1
          %s598 = scalar_lea.sflag [#allocation4], %s597
          %s599 = sand.u32 %s240, 1
          %s600 = scalar_lea.vmem [#allocation8], %s599
          %602 = dma.done %s598, 16
        $region80: #{tpu_custom_call.1} parent=75 // pred_fallthru
          _
      $region76: #{tpu_custom_call.1} parent=5 // pred_fallthru
        _
    $region6: #{tpu_custom_call.1} parent=1 // loop_footer
      %s26 = sadd.s32 1, %s22
    $region7: #{tpu_custom_call.1} parent=1 // loop_footer_branch
      %21 = sbr.rel target = $region3
    $region8: #{tpu_custom_call.1} parent=1 // loop_exit
      _
    %603 = vsyncpa [#allocation3], 1
    %s604 = scalar_lea.sflag [#allocation3], 1
    %605 = vsyncpa %s604, 1
    %606 = vsyncpa [#allocation6], 1
    %607 = vsyncpa [#allocation4], 1
    %s608 = scalar_lea.sflag [#allocation4], 1
    %609 = vsyncpa %s608, 1

</llo_original>
